<compile_context>
chip_gen: v7x
topology: tpu7x:2x2x1
jax: 0.10.0
libtpu: 0.0.40
codegen_flags: <defaults>
</compile_context>

<pallas_src>
import functools
import math

import jax
import jax.numpy as jnp
from jax.experimental import pallas as pl
from jax.experimental.pallas import tpu as pltpu


def _round_up(n, m):
    return ((n + m - 1) // m) * m


def _es_discrete_kernel(x_ref, w1_ref, b1_ref, w2_ref, b2_ref, w3_ref, b3_ref,
                        out_ref, *, dim_action):
    """MLP -> softmax -> categorical entropy for one batch tile.

    Writes a lane-dense slab: probs in columns [0, dim_action), entropy in
    column dim_action, ~0 in the remaining padded columns.
    """
    neg_slope = jnp.float32(0.01)  # torch.nn.LeakyReLU default

    # Layer 1 + LeakyReLU (x/w1 may be bf16 storage -> native MXU; math in f32).
    h1 = jnp.dot(x_ref[...], w1_ref[...], preferred_element_type=jnp.float32)
    h1 = h1 + b1_ref[...].astype(jnp.float32)
    h1 = jnp.where(h1 > 0, h1, neg_slope * h1)

    # Layer 2 + LeakyReLU
    w2 = w2_ref[...].astype(jnp.float32)
    h2 = jnp.dot(h1, w2, preferred_element_type=jnp.float32)
    h2 = h2 + b2_ref[...].astype(jnp.float32)
    h2 = jnp.where(h2 > 0, h2, neg_slope * h2)

    # Layer 3 (logits, padded to A_pad lanes; padded columns have bias -1e30).
    w3 = w3_ref[...].astype(jnp.float32)
    z = jnp.dot(h2, w3, preferred_element_type=jnp.float32)
    z = z + b3_ref[...].astype(jnp.float32)

    # Numerically stable softmax over the (padded) action axis.  Padded logits
    # are ~-1e30, so exp underflows to exactly 0 and they contribute nothing.
    z_max = jnp.max(z, axis=-1, keepdims=True)
    zs = z - z_max
    ez = jnp.exp(zs)
    denom = jnp.sum(ez, axis=-1, keepdims=True)
    inv = pl.reciprocal(denom, approx=True)       # EUP slot
    inv = inv * (2.0 - denom * inv)               # one Newton step -> ~f32 acc.
    probs = ez * inv

    # Categorical entropy: -sum p*logp = log(denom) - sum(p * zs)  (sum p == 1).
    ent = jnp.log(denom) - jnp.sum(probs * zs, axis=-1, keepdims=True)

    # Pack lane-dense output slab: probs everywhere, entropy in column A.
    col = jax.lax.broadcasted_iota(jnp.int32, probs.shape, 1)
    slab = jnp.where(col == dim_action, ent, probs)
    out_ref[...] = slab.astype(out_ref.dtype)


def es_discrete_forward(x, params, *, tile_b=512, storage_dtype=None):
    """Run the ESDiscrete forward pass via a batch-tiled Pallas call.

    Args:
      x: [B, dim_state] float32.
      params: dict with w1 [S,H], b1 [1,H], w2 [H,H], b2 [1,H], w3 [H,A], b3 [1,A].
      tile_b: batch rows per grid step (rounded to a multiple of 8).
      storage_dtype: optional low-precision storage dtype (e.g. jnp.bfloat16)
        for x and the weight matrices; in-kernel math stays f32.

    Returns:
      (action_probs [B, A], entropy [B]) matching the torch module.
    """
    B, S = x.shape
    H = params["w1"].shape[1]
    A = params["w3"].shape[1]

    # Lane-dense output: probs in cols [0, A), entropy in col A, zero-padding.
    a_pad = _round_up(A + 1, 128)

    # Batch tiling (multiple of 8 sublanes; pad B up to a whole number of tiles).
    tile_b = max(8, min(int(tile_b), _round_up(B, 8)))
    tile_b = _round_up(tile_b, 8)
    b_pad = _round_up(B, tile_b)
    num_tiles = b_pad // tile_b

    # Pad the last layer so its output is already lane-dense.  Padded weight
    # columns are zero; padded bias columns are a large-negative finite number
    # so their softmax probability underflows to exactly 0 (no inf/NaN).
    w3p = jnp.zeros((H, a_pad), jnp.float32).at[:, :A].set(
        params["w3"].astype(jnp.float32))
    b3p = jnp.full((1, a_pad), -1e30, jnp.float32).at[:, :A].set(
        params["b3"].astype(jnp.float32))

    xp = x if b_pad == B else jnp.pad(x, ((0, b_pad - B), (0, 0)))

    w1 = params["w1"]
    w2 = params["w2"]
    if storage_dtype is not None:
        # bf16 storage halves HBM->VMEM bytes on v6e/v7x; kernel math stays f32.
        xp = xp.astype(storage_dtype)
        w1 = w1.astype(storage_dtype)
        w2 = w2.astype(storage_dtype)
        w3p = w3p.astype(storage_dtype)

    flops = 2 * b_pad * (S * H + H * H + H * a_pad)
    transcendentals = b_pad * (a_pad + 2)  # exp per logit + log + recip per row
    bytes_accessed = (
        xp.size * xp.dtype.itemsize
        + w1.size * w1.dtype.itemsize
        + w2.size * w2.dtype.itemsize
        + w3p.size * w3p.dtype.itemsize
        + params["b1"].size * 4 + params["b2"].size * 4 + b3p.size * 4
        + b_pad * a_pad * 4)

    slab = pl.pallas_call(
        functools.partial(_es_discrete_kernel, dim_action=A),
        out_shape=jax.ShapeDtypeStruct((b_pad, a_pad), jnp.float32),
        grid=(num_tiles,),
        in_specs=[
            pl.BlockSpec((tile_b, S), lambda i: (i, 0)),   # x tile
            pl.BlockSpec((S, H), lambda i: (0, 0)),        # w1 (VMEM-resident)
            pl.BlockSpec((1, H), lambda i: (0, 0)),        # b1
            pl.BlockSpec((H, H), lambda i: (0, 0)),        # w2
            pl.BlockSpec((1, H), lambda i: (0, 0)),        # b2
            pl.BlockSpec((H, a_pad), lambda i: (0, 0)),    # w3 (padded)
            pl.BlockSpec((1, a_pad), lambda i: (0, 0)),    # b3 (padded)
        ],
        out_specs=pl.BlockSpec((tile_b, a_pad), lambda i: (i, 0)),
        compiler_params=pltpu.CompilerParams(
            dimension_semantics=("parallel",)),
        cost_estimate=pl.CostEstimate(
            flops=flops,
            transcendentals=transcendentals,
            bytes_accessed=bytes_accessed),
    )(xp, w1, params["b1"], w2, params["b2"], w3p, b3p)

    probs = slab[:B, :A]
    entropy = slab[:B, A]
    return probs, entropy


def init_params(key, dim_state, dim_hidden, dim_action):
    """Xavier-normal weights (gain=1), zero biases — mirrors init_weight."""
    k1, k2, k3 = jax.random.split(key, 3)

    def xavier(k, fan_in, fan_out):
        std = math.sqrt(2.0 / (fan_in + fan_out))
        # stored as [in, out] (transposed relative to torch's [out, in])
        return std * jax.random.normal(k, (fan_in, fan_out), dtype=jnp.float32)

    return {
        "w1": xavier(k1, dim_state, dim_hidden),
        "b1": jnp.zeros((1, dim_hidden), jnp.float32),
        "w2": xavier(k2, dim_hidden, dim_hidden),
        "b2": jnp.zeros((1, dim_hidden), jnp.float32),
        "w3": xavier(k3, dim_hidden, dim_action),
        "b3": jnp.zeros((1, dim_action), jnp.float32),
    }


def _reference(x, p):
    """Pure-JAX reference for a sanity check."""
    lrelu = lambda v: jnp.where(v > 0, v, 0.01 * v)
    h1 = lrelu(x @ p["w1"] + p["b1"])
    h2 = lrelu(h1 @ p["w2"] + p["b2"])
    z = h2 @ p["w3"] + p["b3"]
    probs = jax.nn.softmax(z, axis=-1)
    ent = -jnp.sum(probs * jnp.log(probs), axis=-1)
    return probs, ent


if __name__ == "__main__":
    # Small, ESDiscrete-consistent shapes (CartPole-like env).
    batch = 20          # not a multiple of the tile -> exercises padding/slice
    dim_state = 4
    dim_hidden = 32
    dim_action = 2

    key = jax.random.PRNGKey(0)
    kx, kp = jax.random.split(key)
    x = jax.random.normal(kx, (batch, dim_state), dtype=jnp.float32)
    params = init_params(kp, dim_state, dim_hidden, dim_action)

    ref_probs, ref_ent = _reference(x, params)

    # f32 path; tiny tile so the batch grid has multiple (parallel) steps.
    probs, entropy = es_discrete_forward(x, params, tile_b=8)
    jax.block_until_ready((probs, entropy))

    assert probs.shape == (batch, dim_action)
    assert entropy.shape == (batch,)
    assert jnp.allclose(probs, ref_probs, atol=1e-4)
    assert jnp.allclose(entropy, ref_ent, atol=1e-4)
    assert jnp.allclose(jnp.sum(probs, axis=-1), 1.0, atol=1e-4)

    # bf16-storage path (DMA savings on v6e/v7x); kernel math stays f32.
    probs_bf, ent_bf = es_discrete_forward(
        x, params, tile_b=8, storage_dtype=jnp.bfloat16)
    jax.block_until_ready((probs_bf, ent_bf))
    assert jnp.allclose(probs_bf, ref_probs, atol=5e-2)
    assert jnp.allclose(ent_bf, ref_ent, atol=5e-2)

    print("KERNEL_OK")
</pallas_src>

<mosaic_0001>
module attributes {stable_mosaic.version = 11 : i64} {
  func.func @_es_discrete_kernel(%arg0: i32, %arg1: memref<8x4xf32, #tpu.memory_space<vmem>>, %arg2: memref<4x32xf32, #tpu.memory_space<vmem>>, %arg3: memref<1x32xf32, #tpu.memory_space<vmem>>, %arg4: memref<32x32xf32, #tpu.memory_space<vmem>>, %arg5: memref<1x32xf32, #tpu.memory_space<vmem>>, %arg6: memref<32x128xf32, #tpu.memory_space<vmem>>, %arg7: memref<1x128xf32, #tpu.memory_space<vmem>>, %arg8: memref<8x128xf32, #tpu.memory_space<vmem>>) attributes {dimension_semantics = [#tpu.dimension_semantics<parallel>], iteration_bounds = array<i64: 3>, scalar_prefetch = 0 : i64, scratch_operands = 0 : i64, tpu.core_type = #tpu.core_type<tc>, window_params = [{transform_indices = @transform_0, window_bounds = array<i64: 8, 4>}, {pipeline_mode = #tpu.pipeline_mode<synchronous>, transform_indices = @transform_1, window_bounds = array<i64: 4, 32>}, {pipeline_mode = #tpu.pipeline_mode<synchronous>, transform_indices = @transform_2, window_bounds = array<i64: 1, 32>}, {pipeline_mode = #tpu.pipeline_mode<synchronous>, transform_indices = @transform_3, window_bounds = array<i64: 32, 32>}, {pipeline_mode = #tpu.pipeline_mode<synchronous>, transform_indices = @transform_4, window_bounds = array<i64: 1, 32>}, {pipeline_mode = #tpu.pipeline_mode<synchronous>, transform_indices = @transform_5, window_bounds = array<i64: 32, 128>}, {pipeline_mode = #tpu.pipeline_mode<synchronous>, transform_indices = @transform_6, window_bounds = array<i64: 1, 128>}, {transform_indices = @transform_7, window_bounds = array<i64: 8, 128>}]} {
    %c0 = arith.constant 0 : index
    %c0_0 = arith.constant 0 : index
    %0 = vector.load %arg1[%c0, %c0_0] : memref<8x4xf32, #tpu.memory_space<vmem>>, vector<8x4xf32>
    %c0_1 = arith.constant 0 : index
    %c0_2 = arith.constant 0 : index
    %1 = vector.load %arg2[%c0_1, %c0_2] : memref<4x32xf32, #tpu.memory_space<vmem>>, vector<4x32xf32>
    %cst = arith.constant dense<0.000000e+00> : vector<8x32xf32>
    %2 = tpu.matmul %0, %1, %cst {dimension_numbers = #tpu.dot_dimension_numbers<[1], [0], [0], [1], [0, 0, 1, 1], [], []>} : vector<8x4xf32>, vector<4x32xf32>, vector<8x32xf32> -> vector<8x32xf32>
    %c0_3 = arith.constant 0 : index
    %c0_4 = arith.constant 0 : index
    %3 = vector.load %arg3[%c0_3, %c0_4] : memref<1x32xf32, #tpu.memory_space<vmem>>, vector<1x32xf32>
    %4 = vector.broadcast %3 : vector<1x32xf32> to vector<8x32xf32>
    %5 = arith.addf %2, %4 : vector<8x32xf32>
    %cst_5 = arith.constant 0.000000e+00 : f32
    %6 = vector.broadcast %cst_5 : f32 to vector<8x32xf32>
    %7 = arith.cmpf ogt, %5, %6 : vector<8x32xf32>
    %cst_6 = arith.constant 0.00999999977 : f32
    %8 = vector.broadcast %cst_6 : f32 to vector<8x32xf32>
    %9 = arith.mulf %8, %5 : vector<8x32xf32>
    %10 = arith.select %7, %5, %9 : vector<8x32xi1>, vector<8x32xf32>
    %c0_7 = arith.constant 0 : index
    %c0_8 = arith.constant 0 : index
    %11 = vector.load %arg4[%c0_7, %c0_8] : memref<32x32xf32, #tpu.memory_space<vmem>>, vector<32x32xf32>
    %cst_9 = arith.constant dense<0.000000e+00> : vector<8x32xf32>
    %12 = tpu.matmul %10, %11, %cst_9 {dimension_numbers = #tpu.dot_dimension_numbers<[1], [0], [0], [1], [0, 0, 1, 1], [], []>} : vector<8x32xf32>, vector<32x32xf32>, vector<8x32xf32> -> vector<8x32xf32>
    %c0_10 = arith.constant 0 : index
    %c0_11 = arith.constant 0 : index
    %13 = vector.load %arg5[%c0_10, %c0_11] : memref<1x32xf32, #tpu.memory_space<vmem>>, vector<1x32xf32>
    %14 = vector.broadcast %13 : vector<1x32xf32> to vector<8x32xf32>
    %15 = arith.addf %12, %14 : vector<8x32xf32>
    %cst_12 = arith.constant 0.000000e+00 : f32
    %16 = vector.broadcast %cst_12 : f32 to vector<8x32xf32>
    %17 = arith.cmpf ogt, %15, %16 : vector<8x32xf32>
    %cst_13 = arith.constant 0.00999999977 : f32
    %18 = vector.broadcast %cst_13 : f32 to vector<8x32xf32>
    %19 = arith.mulf %18, %15 : vector<8x32xf32>
    %20 = arith.select %17, %15, %19 : vector<8x32xi1>, vector<8x32xf32>
    %c0_14 = arith.constant 0 : index
    %c0_15 = arith.constant 0 : index
    %21 = vector.load %arg6[%c0_14, %c0_15] : memref<32x128xf32, #tpu.memory_space<vmem>>, vector<32x128xf32>
    %cst_16 = arith.constant dense<0.000000e+00> : vector<8x128xf32>
    %22 = tpu.matmul %20, %21, %cst_16 {dimension_numbers = #tpu.dot_dimension_numbers<[1], [0], [0], [1], [0, 0, 1, 1], [], []>} : vector<8x32xf32>, vector<32x128xf32>, vector<8x128xf32> -> vector<8x128xf32>
    %c0_17 = arith.constant 0 : index
    %c0_18 = arith.constant 0 : index
    %23 = vector.load %arg7[%c0_17, %c0_18] : memref<1x128xf32, #tpu.memory_space<vmem>>, vector<1x128xf32>
    %24 = vector.broadcast %23 : vector<1x128xf32> to vector<8x128xf32>
    %25 = arith.addf %22, %24 : vector<8x128xf32>
    %cst_19 = arith.constant dense<0xFF800000> : vector<8xf32>
    %26 = vector.multi_reduction <maximumf>, %25, %cst_19 [1] : vector<8x128xf32> to vector<8xf32>
    %27 = vector.shape_cast %26 : vector<8xf32> to vector<8x1xf32>
    %28 = vector.broadcast %27 : vector<8x1xf32> to vector<8x128xf32>
    %29 = arith.subf %25, %28 : vector<8x128xf32>
    %30 = math.exp %29 : vector<8x128xf32>
    %cst_20 = arith.constant dense<0.000000e+00> : vector<8xf32>
    %31 = vector.multi_reduction <add>, %30, %cst_20 [1] : vector<8x128xf32> to vector<8xf32>
    %32 = vector.shape_cast %31 : vector<8xf32> to vector<8x1xf32>
    %33 = tpu.reciprocal %32 {approx = true} : vector<8x1xf32> -> vector<8x1xf32>
    %34 = arith.mulf %32, %33 : vector<8x1xf32>
    %cst_21 = arith.constant 2.000000e+00 : f32
    %35 = vector.broadcast %cst_21 : f32 to vector<8x1xf32>
    %36 = arith.subf %35, %34 : vector<8x1xf32>
    %37 = arith.mulf %33, %36 : vector<8x1xf32>
    %38 = vector.broadcast %37 : vector<8x1xf32> to vector<8x128xf32>
    %39 = arith.mulf %30, %38 : vector<8x128xf32>
    %40 = math.log %32 : vector<8x1xf32>
    %41 = arith.mulf %39, %29 : vector<8x128xf32>
    %cst_22 = arith.constant dense<0.000000e+00> : vector<8xf32>
    %42 = vector.multi_reduction <add>, %41, %cst_22 [1] : vector<8x128xf32> to vector<8xf32>
    %43 = vector.shape_cast %42 : vector<8xf32> to vector<8x1xf32>
    %44 = arith.subf %40, %43 : vector<8x1xf32>
    %45 = tpu.iota {dimensions = array<i32: 1>} : vector<8x128xi32>
    %c2_i32 = arith.constant 2 : i32
    %46 = vector.broadcast %c2_i32 : i32 to vector<8x128xi32>
    %47 = arith.cmpi eq, %45, %46 : vector<8x128xi32>
    %48 = vector.shape_cast %44 : vector<8x1xf32> to vector<8x1xf32>
    %49 = vector.broadcast %48 : vector<8x1xf32> to vector<8x128xf32>
    %50 = arith.select %47, %49, %39 : vector<8x128xi1>, vector<8x128xf32>
    %c0_23 = arith.constant 0 : index
    %c0_24 = arith.constant 0 : index
    %51 = vector.load %arg8[%c0_23, %c0_24] : memref<8x128xf32, #tpu.memory_space<vmem>>, vector<8x128xf32>
    tpu.vector_store %arg8[%c0_23, %c0_24], %50 {strides = array<i32>} : memref<8x128xf32, #tpu.memory_space<vmem>>, vector<8x128xf32>,
    return
  }
  func.func @transform_0(%arg0: i32) -> (i32, i32) {
    %c0_i32 = arith.constant 0 : i32
    %c0_i32_0 = arith.constant 0 : i32
    return %arg0, %c0_i32 : i32, i32
  }
  func.func @transform_1(%arg0: i32) -> (i32, i32) {
    %c0_i32 = arith.constant 0 : i32
    %c0_i32_0 = arith.constant 0 : i32
    %c0_i32_1 = arith.constant 0 : i32
    return %c0_i32, %c0_i32_0 : i32, i32
  }
  func.func @transform_2(%arg0: i32) -> (i32, i32) {
    %c0_i32 = arith.constant 0 : i32
    %c0_i32_0 = arith.constant 0 : i32
    %c0_i32_1 = arith.constant 0 : i32
    return %c0_i32, %c0_i32_0 : i32, i32
  }
  func.func @transform_3(%arg0: i32) -> (i32, i32) {
    %c0_i32 = arith.constant 0 : i32
    %c0_i32_0 = arith.constant 0 : i32
    %c0_i32_1 = arith.constant 0 : i32
    return %c0_i32, %c0_i32_0 : i32, i32
  }
  func.func @transform_4(%arg0: i32) -> (i32, i32) {
    %c0_i32 = arith.constant 0 : i32
    %c0_i32_0 = arith.constant 0 : i32
    %c0_i32_1 = arith.constant 0 : i32
    return %c0_i32, %c0_i32_0 : i32, i32
  }
  func.func @transform_5(%arg0: i32) -> (i32, i32) {
    %c0_i32 = arith.constant 0 : i32
    %c0_i32_0 = arith.constant 0 : i32
    %c0_i32_1 = arith.constant 0 : i32
    return %c0_i32, %c0_i32_0 : i32, i32
  }
  func.func @transform_6(%arg0: i32) -> (i32, i32) {
    %c0_i32 = arith.constant 0 : i32
    %c0_i32_0 = arith.constant 0 : i32
    %c0_i32_1 = arith.constant 0 : i32
    return %c0_i32, %c0_i32_0 : i32, i32
  }
  func.func @transform_7(%arg0: i32) -> (i32, i32) {
    %c0_i32 = arith.constant 0 : i32
    %c0_i32_0 = arith.constant 0 : i32
    return %arg0, %c0_i32 : i32, i32
  }
}

</mosaic_0001>

<llo_original>
// kernel: tpu_custom_call.1
$region0: #{tpu_custom_call.1}
  #allocation0 [shape = 'u32[]', space=smem, size = 0x4, offset = 0x4, fixed_abs, tag = 'smem constant byte address 0x4 - core index']
  #allocation1 [shape = 'u32[144,128]{1,0:T(1,128)}', space=vmem, size = 0x12000, scoped, tag = 'internal scratch']
  %s0 = inlined_call_operand.vmem [shape: f32[24,4], index: 0, kind: input, shape index: {}]
  %s1 = inlined_call_operand.vmem [shape: f32[4,32], index: 1, kind: input, shape index: {}]
  %s2 = inlined_call_operand.vmem [shape: f32[1,32], index: 2, kind: input, shape index: {}]
  %s3 = inlined_call_operand.vmem [shape: f32[32,32], index: 3, kind: input, shape index: {}]
  %s4 = inlined_call_operand.vmem [shape: f32[1,32], index: 4, kind: input, shape index: {}]
  %s5 = inlined_call_operand.hbm [shape: f32[32,128], index: 5, kind: input, shape index: {}]
  %s6 = inlined_call_operand.vmem [shape: f32[1,128], index: 6, kind: input, shape index: {}]
  %s7 = inlined_call_operand.hbm [shape: f32[24,128], index: 7, kind: output, shape index: {}]
  %s8 = sld [smem:[#allocation0]]
  $region65: #{tpu_custom_call.1} parent=0
    _
  %s10 = ssub.s32 1, %s8
  %s11 = scalar_select 0, %s10, %s8
  $region1: #{tpu_custom_call.1} parent=0
    #allocation2 [shape = 'u8[16384]{0}', space=vmem, size = 0x4000, scoped, tag = 'input window, operand 5, single buffered']
    #allocation3 [shape = 's32[2]{0}', space=sflag, size = 0x8, scoped, tag = 'scoped memory for tpu_custom_call.1']
    #allocation4 [shape = 's32[2]{0}', space=sflag, size = 0x8, scoped, tag = 'scoped memory for tpu_custom_call.1']
    #allocation5 [shape = 'u8[8192]{0}', space=vmem, size = 0x2000, scoped, tag = 'output window, operand 0']
    %12 = vsyncpa [#allocation3], 0
    %13 = vsyncpa [#allocation4], 0
    %s14 = scalar_lea.sflag [#allocation4], 1
    %15 = vsyncpa %s14, 0
    loop: start=0, step=1, limit=5
    $region2: #{tpu_custom_call.1} parent=1 // loop_pre_header
      _
    $region3: #{tpu_custom_call.1} parent=1 // loop_header
      %s17 = sphi 0, %s21
      %p18 = scmp.ge.s32.totalorder %s17, 5
      %s27 = sphi 0, %s29
      %s30 = sphi 0, %s27
      %s31 = sphi 0, %s30
      %s47 = sphi 0, %s31
      %s51 = sphi 0, %s51
      %s53 = sphi 0, %s51
      %s54 = sphi 0, %s53
      %s68 = sphi 0, %s54
      %s72 = sphi 0, %s72
      %s74 = sphi 0, %s72
      %s75 = sphi 0, %s74
      %s89 = sphi 0, %s75
      %s93 = sphi 0, %s93
      %s95 = sphi 0, %s93
      %s96 = sphi 0, %s95
      %s110 = sphi 0, %s96
      %s114 = sphi 0, %s114
      %s116 = sphi 0, %s114
      %s117 = sphi 0, %s116
      %s131 = sphi 0, %s117
      %s135 = sphi 0, %s135
      %s137 = sphi 0, %s135
      %s138 = sphi 0, %s137
      %s152 = sphi 0, %s138
      %s156 = sphi 0, %s156
      %s158 = sphi 0, %s156
      %s159 = sphi 0, %s158
      %s173 = sphi 0, %s159
      %s179 = sphi 0, %s181
      %s182 = sphi 0, %s179
      %s183 = sphi 0, %s182
      %s199 = sphi 0, %s183
    $region4: #{tpu_custom_call.1} parent=1 // loop_header_branch
      %20 = sbr.rel (%p18) target = $region8
    $region5: #{tpu_custom_call.1} parent=1 // loop_body
      %s22 = ssub.s32 %s17, 1
      %s23 = ssub.s32 %s17, 2
      %s24 = sadd.s32 %s17, 1
      %s25 = ssub.s32 %s17, %s24
      %p26 = scmp.eq.s32.totalorder %s25, 0
      %s28 = sadd.s32 %s27, 1
      %s29 = scalar_select %p26, %s27, %s28
      %p32 = pneg %p26
      %p33 = scmp.eq.s32.totalorder %s17, 2
      %p34 = por %p32, %p33
      %p35 = scmp.ne.s32.totalorder %s27, %s30
      %p36 = scmp.eq.s32.totalorder %s17, 0
      %p37 = por %p35, %p36
      %p38 = scmp.ne.s32.totalorder %s27, %s30
      %p39 = scmp.eq.s32.totalorder %s22, 2
      %p40 = por %p38, %p39
      %p41 = scmp.ne.s32.totalorder %s30, %s31
      %p42 = scmp.eq.s32.totalorder %s22, 0
      %p43 = por %p41, %p42
      %p44 = scmp.ne.s32.totalorder %s30, %s31
      %p45 = scmp.eq.s32.totalorder %s23, 2
      %p46 = por %p44, %p45
      %p48 = scmp.ne.s32.totalorder %s31, %s47
      %p49 = scmp.eq.s32.totalorder %s23, 0
      %p50 = por %p48, %p49
      %s52 = sadd.s32 %s51, 1
      %p55 = scmp.eq.s32.totalorder %s17, 2
      %p56 = scmp.ne.s32.totalorder %s51, %s53
      %p57 = scmp.eq.s32.totalorder %s17, 0
      %p58 = por %p56, %p57
      %p59 = scmp.ne.s32.totalorder %s51, %s53
      %p60 = scmp.eq.s32.totalorder %s22, 2
      %p61 = por %p59, %p60
      %p62 = scmp.ne.s32.totalorder %s53, %s54
      %p63 = scmp.eq.s32.totalorder %s22, 0
      %p64 = por %p62, %p63
      %p65 = scmp.ne.s32.totalorder %s53, %s54
      %p66 = scmp.eq.s32.totalorder %s23, 2
      %p67 = por %p65, %p66
      %p69 = scmp.ne.s32.totalorder %s54, %s68
      %p70 = scmp.eq.s32.totalorder %s23, 0
      %p71 = por %p69, %p70
      %s73 = sadd.s32 %s72, 1
      %p76 = scmp.eq.s32.totalorder %s17, 2
      %p77 = scmp.ne.s32.totalorder %s72, %s74
      %p78 = scmp.eq.s32.totalorder %s17, 0
      %p79 = por %p77, %p78
      %p80 = scmp.ne.s32.totalorder %s72, %s74
      %p81 = scmp.eq.s32.totalorder %s22, 2
      %p82 = por %p80, %p81
      %p83 = scmp.ne.s32.totalorder %s74, %s75
      %p84 = scmp.eq.s32.totalorder %s22, 0
      %p85 = por %p83, %p84
      %p86 = scmp.ne.s32.totalorder %s74, %s75
      %p87 = scmp.eq.s32.totalorder %s23, 2
      %p88 = por %p86, %p87
      %p90 = scmp.ne.s32.totalorder %s75, %s89
      %p91 = scmp.eq.s32.totalorder %s23, 0
      %p92 = por %p90, %p91
      %s94 = sadd.s32 %s93, 1
      %p97 = scmp.eq.s32.totalorder %s17, 2
      %p98 = scmp.ne.s32.totalorder %s93, %s95
      %p99 = scmp.eq.s32.totalorder %s17, 0
      %p100 = por %p98, %p99
      %p101 = scmp.ne.s32.totalorder %s93, %s95
      %p102 = scmp.eq.s32.totalorder %s22, 2
      %p103 = por %p101, %p102
      %p104 = scmp.ne.s32.totalorder %s95, %s96
      %p105 = scmp.eq.s32.totalorder %s22, 0
      %p106 = por %p104, %p105
      %p107 = scmp.ne.s32.totalorder %s95, %s96
      %p108 = scmp.eq.s32.totalorder %s23, 2
      %p109 = por %p107, %p108
      %p111 = scmp.ne.s32.totalorder %s96, %s110
      %p112 = scmp.eq.s32.totalorder %s23, 0
      %p113 = por %p111, %p112
      %s115 = sadd.s32 %s114, 1
      %p118 = scmp.eq.s32.totalorder %s17, 2
      %p119 = scmp.ne.s32.totalorder %s114, %s116
      %p120 = scmp.eq.s32.totalorder %s17, 0
      %p121 = por %p119, %p120
      %p122 = scmp.ne.s32.totalorder %s114, %s116
      %p123 = scmp.eq.s32.totalorder %s22, 2
      %p124 = por %p122, %p123
      %p125 = scmp.ne.s32.totalorder %s116, %s117
      %p126 = scmp.eq.s32.totalorder %s22, 0
      %p127 = por %p125, %p126
      %p128 = scmp.ne.s32.totalorder %s116, %s117
      %p129 = scmp.eq.s32.totalorder %s23, 2
      %p130 = por %p128, %p129
      %p132 = scmp.ne.s32.totalorder %s117, %s131
      %p133 = scmp.eq.s32.totalorder %s23, 0
      %p134 = por %p132, %p133
      %s136 = sadd.s32 %s135, 1
      %p139 = scmp.eq.s32.totalorder %s17, 2
      %p140 = scmp.ne.s32.totalorder %s135, %s137
      %p141 = scmp.eq.s32.totalorder %s17, 0
      %p142 = por %p140, %p141
      %p143 = scmp.ne.s32.totalorder %s135, %s137
      %p144 = scmp.eq.s32.totalorder %s22, 2
      %p145 = por %p143, %p144
      %p146 = scmp.ne.s32.totalorder %s137, %s138
      %p147 = scmp.eq.s32.totalorder %s22, 0
      %p148 = por %p146, %p147
      %p149 = scmp.ne.s32.totalorder %s137, %s138
      %p150 = scmp.eq.s32.totalorder %s23, 2
      %p151 = por %p149, %p150
      %p153 = scmp.ne.s32.totalorder %s138, %s152
      %p154 = scmp.eq.s32.totalorder %s23, 0
      %p155 = por %p153, %p154
      %s157 = sadd.s32 %s156, 1
      %p160 = scmp.eq.s32.totalorder %s17, 2
      %p161 = scmp.ne.s32.totalorder %s156, %s158
      %p162 = scmp.eq.s32.totalorder %s17, 0
      %p163 = por %p161, %p162
      %p164 = scmp.ne.s32.totalorder %s156, %s158
      %p165 = scmp.eq.s32.totalorder %s22, 2
      %p166 = por %p164, %p165
      %p167 = scmp.ne.s32.totalorder %s158, %s159
      %p168 = scmp.eq.s32.totalorder %s22, 0
      %p169 = por %p167, %p168
      %p170 = scmp.ne.s32.totalorder %s158, %s159
      %p171 = scmp.eq.s32.totalorder %s23, 2
      %p172 = por %p170, %p171
      %p174 = scmp.ne.s32.totalorder %s159, %s173
      %p175 = scmp.eq.s32.totalorder %s23, 0
      %p176 = por %p174, %p175
      %s177 = ssub.s32 %s17, %s24
      %p178 = scmp.eq.s32.totalorder %s177, 0
      %s180 = sadd.s32 %s179, 1
      %s181 = scalar_select %p178, %s179, %s180
      %p184 = pneg %p178
      %p185 = scmp.eq.s32.totalorder %s17, 2
      %p186 = por %p184, %p185
      %p187 = scmp.ne.s32.totalorder %s179, %s182
      %p188 = scmp.eq.s32.totalorder %s17, 0
      %p189 = por %p187, %p188
      %p190 = scmp.ne.s32.totalorder %s179, %s182
      %p191 = scmp.eq.s32.totalorder %s22, 2
      %p192 = por %p190, %p191
      %p193 = scmp.ne.s32.totalorder %s182, %s183
      %p194 = scmp.eq.s32.totalorder %s22, 0
      %p195 = por %p193, %p194
      %p196 = scmp.ne.s32.totalorder %s182, %s183
      %p197 = scmp.eq.s32.totalorder %s23, 2
      %p198 = por %p196, %p197
      %p200 = scmp.ne.s32.totalorder %s183, %s199
      %p201 = scmp.eq.s32.totalorder %s23, 0
      %p202 = por %p200, %p201
      %p203 = scmp.le.s32.totalorder 1, %s17
      %p204 = scmp.lt.s32.totalorder %s17, 4
      %p205 = pnand %p203, %p204
      %p206 = pneg %p205
      // Predicated region
      $region9: #{tpu_custom_call.1} parent=5 // pred_check
        _
      $region10: #{tpu_custom_call.1} parent=5 // pred_check_branch
        %208 = sbr.rel (%p205) target = $region12
      $region11: #{tpu_custom_call.1} parent=5 // pred_region
        %s209 = ssub.s32 %s17, 1
        // Predicated region
        $region13: #{tpu_custom_call.1} parent=11 // pred_check
          %p210 = pneg %p64
        $region14: #{tpu_custom_call.1} parent=11 // pred_check_branch
          %212 = sbr.rel (%p210) target = $region16
        $region15: #{tpu_custom_call.1} parent=11 // pred_region
          _
        $region16: #{tpu_custom_call.1} parent=11 // pred_fallthru
          _
        // Predicated region
        $region17: #{tpu_custom_call.1} parent=11 // pred_check
          %p213 = pneg %p85
        $region18: #{tpu_custom_call.1} parent=11 // pred_check_branch
          %215 = sbr.rel (%p213) target = $region20
        $region19: #{tpu_custom_call.1} parent=11 // pred_region
          _
        $region20: #{tpu_custom_call.1} parent=11 // pred_fallthru
          _
        // Predicated region
        $region21: #{tpu_custom_call.1} parent=11 // pred_check
          %p216 = pneg %p106
        $region22: #{tpu_custom_call.1} parent=11 // pred_check_branch
          %218 = sbr.rel (%p216) target = $region24
        $region23: #{tpu_custom_call.1} parent=11 // pred_region
          _
        $region24: #{tpu_custom_call.1} parent=11 // pred_fallthru
          _
        // Predicated region
        $region25: #{tpu_custom_call.1} parent=11 // pred_check
          %p219 = pneg %p127
        $region26: #{tpu_custom_call.1} parent=11 // pred_check_branch
          %221 = sbr.rel (%p219) target = $region28
        $region27: #{tpu_custom_call.1} parent=11 // pred_region
          _
        $region28: #{tpu_custom_call.1} parent=11 // pred_fallthru
          _
        // Predicated region
        $region29: #{tpu_custom_call.1} parent=11 // pred_check
          %p222 = pneg %p148
        $region30: #{tpu_custom_call.1} parent=11 // pred_check_branch
          %224 = sbr.rel (%p222) target = $region32
        $region31: #{tpu_custom_call.1} parent=11 // pred_region
          %s226 = ssub.s32 512, 512
          %227 = vsyncadd [#allocation3], %s226
          %s228 = sshll.u32 [#allocation2], 4
          %s229 = int_to_ptr.vmem [resolvable:$true] %s228
          %234 = dma.hbm_to_vmem [thread:$0]  %s5, 512, %s229, [#allocation3], 128, 128, 8
        $region32: #{tpu_custom_call.1} parent=11 // pred_fallthru
          _
        // Predicated region
        $region33: #{tpu_custom_call.1} parent=11 // pred_check
          %p235 = pneg %p169
        $region34: #{tpu_custom_call.1} parent=11 // pred_check_branch
          %237 = sbr.rel (%p235) target = $region36
        $region35: #{tpu_custom_call.1} parent=11 // pred_region
          _
        $region36: #{tpu_custom_call.1} parent=11 // pred_fallthru
          _
      $region12: #{tpu_custom_call.1} parent=5 // pred_fallthru
        _
      %p238 = scmp.lt.s32.totalorder %s17, 3
      // Predicated region
      $region37: #{tpu_custom_call.1} parent=5 // pred_check
        %p239 = pneg %p238
      $region38: #{tpu_custom_call.1} parent=5 // pred_check_branch
        %241 = sbr.rel (%p239) target = $region40
      $region39: #{tpu_custom_call.1} parent=5 // pred_region
        // Predicated region
        $region41: #{tpu_custom_call.1} parent=39 // pred_check
          %p242 = pneg %p37
        $region42: #{tpu_custom_call.1} parent=39 // pred_check_branch
          %244 = sbr.rel (%p242) target = $region44
        $region43: #{tpu_custom_call.1} parent=39 // pred_region
          %p245 = scmp.lt.s32.totalorder %s17, 2
          %s246 = scalar_select %p245, %s17, 2
          %s247 = smul.addr %s246, 8
          %s248 = scalar_lea.vmem %s0, %s247
        $region44: #{tpu_custom_call.1} parent=39 // pred_fallthru
          _
      $region40: #{tpu_custom_call.1} parent=5 // pred_fallthru
        _
      %p249 = scmp.le.s32.totalorder 1, %s17
      %p250 = scmp.lt.s32.totalorder %s17, 4
      %p251 = pnand %p249, %p250
      %p252 = pneg %p251
      // Predicated region
      $region45: #{tpu_custom_call.1} parent=5 // pred_check
        _
      $region46: #{tpu_custom_call.1} parent=5 // pred_check_branch
        %254 = sbr.rel (%p251) target = $region48
      $region47: #{tpu_custom_call.1} parent=5 // pred_region
        %s255 = ssub.s32 %s17, 1
        // Predicated region
        $region49: #{tpu_custom_call.1} parent=47 // pred_check
          %p256 = pneg %p148
        $region50: #{tpu_custom_call.1} parent=47 // pred_check_branch
          %258 = sbr.rel (%p256) target = $region52
        $region51: #{tpu_custom_call.1} parent=47 // pred_region
          %259 = dma.done [#allocation3], 512
        $region52: #{tpu_custom_call.1} parent=47 // pred_fallthru
          _
        %p260 = scmp.lt.s32.totalorder %s22, 2
        %s261 = scalar_select %p260, %s22, 2
        %s262 = smul.addr %s261, 8
        %s263 = scalar_lea.vmem %s0, %s262
        %p264 = pneg %p43
        %p265 = pneg %p40
        %p266 = pneg %p64
        %p267 = pneg %p61
        %p268 = pneg %p85
        %p269 = pneg %p82
        %p270 = pneg %p106
        %p271 = pneg %p103
        %p272 = pneg %p127
        %p273 = pneg %p124
        %p274 = pneg %p148
        %p275 = pneg %p145
        %p276 = pneg %p169
        %p277 = pneg %p166
        %p278 = pneg %p195
        %p279 = pneg %p192
        %s280 = sand.u32 %s182, 1
        %s281 = scalar_lea.sflag [#allocation4], %s280
        %s282 = sand.u32 %s182, 1
        %s283 = smul.addr %s282, 8
        %s284 = scalar_lea.vmem [#allocation5], %s283
        %p285 = scmp.lt.s32.totalorder %s22, 2
        %s286 = scalar_select %p285, %s22, 2
        %s287 = smul.addr %s286, 8
        %s288 = scalar_lea.vmem %s0, %s287
        %v289 = vld [vmem:[%s288] sm:$0xff]
        %v290 = vld [vmem:[%s1] sm:$0xf]
        %v291 = vld [vmem:[%s2] sm:$0x1]
        %v293 = vlaneseq
        %v294 = vshrl.u32 %v293, 7
        %v295 = vsub.s32 0, %v294
        %v296 = vrot.slane %v291, %v295
        %vm298 = vcmask 31744
        %v300 = vsel %vm298, %v289, 0
        %vm302 = vcmask 1043456
        %v304 = vsel %vm302, %v290, 0
        %306 = vmatprep.subr.mxu0 0.0
        %307 = vmatpush1.msra.mxu0 %v304
        %308 = vmatprep.subr.mxu0 0.0
        %309 = vmatpush1.msra.mxu0 0.0
        %310 = vmatprep.subr.mxu0 0.0
        %311 = vmatpush1.msra.mxu0 0.0
        %312 = vmatprep.subr.mxu0 0.0
        %313 = vmatpush1.msra.mxu0 0.0
        %314 = vmatprep.subr.mxu0 0.0
        %315 = vmatpush1.msra.mxu0 0.0
        %316 = vmatprep.subr.mxu0 0.0
        %317 = vmatpush1.msra.mxu0 0.0
        %318 = vmatprep.subr.mxu0 0.0
        %319 = vmatpush1.msra.mxu0 0.0
        %320 = vmatprep.subr.mxu0 0.0
        %321 = vmatpush1.msra.mxu0 0.0
        %322 = vmatprep.subr.mxu0 0.0
        %323 = vmatpush1.msra.mxu0 0.0
        %324 = vmatprep.subr.mxu0 0.0
        %325 = vmatpush1.msra.mxu0 0.0
        %326 = vmatprep.subr.mxu0 0.0
        %327 = vmatpush1.msra.mxu0 0.0
        %328 = vmatprep.subr.mxu0 0.0
        %329 = vmatpush1.msra.mxu0 0.0
        %330 = vmatprep.subr.mxu0 0.0
        %331 = vmatpush1.msra.mxu0 0.0
        %332 = vmatprep.subr.mxu0 0.0
        %333 = vmatpush1.msra.mxu0 0.0
        %334 = vmatprep.subr.mxu0 0.0
        %335 = vmatpush1.msra.mxu0 0.0
        %336 = vmatprep.subr.mxu0 0.0
        %337 = vmatpush1.msra.mxu0 0.0
        %338 = vmatprep.subr.mxu0 0.0
        %339 = vmatpush1.msra.mxu0 0.0
        %340 = vmatprep.subr.mxu0 0.0
        %341 = vmatpush1.msra.mxu0 0.0
        %342 = vmatprep.subr.mxu0 0.0
        %343 = vmatpush1.msra.mxu0 0.0
        %344 = vmatprep.subr.mxu0 0.0
        %345 = vmatpush1.msra.mxu0 0.0
        %346 = vmatprep.subr.mxu0 0.0
        %347 = vmatpush1.msra.mxu0 0.0
        %348 = vmatprep.subr.mxu0 0.0
        %349 = vmatpush1.msra.mxu0 0.0
        %350 = vmatprep.subr.mxu0 0.0
        %351 = vmatpush1.msra.mxu0 0.0
        %352 = vmatprep.subr.mxu0 0.0
        %353 = vmatpush1.msra.mxu0 0.0
        %354 = vmatprep.subr.mxu0 0.0
        %355 = vmatpush1.msra.mxu0 0.0
        %356 = vmatprep.subr.mxu0 0.0
        %357 = vmatpush1.msra.mxu0 0.0
        %358 = vmatprep.subr.mxu0 0.0
        %359 = vmatpush1.msra.mxu0 0.0
        %360 = vmatprep.subr.mxu0 0.0
        %361 = vmatpush1.msra.mxu0 0.0
        %362 = vmatprep.subr.mxu0 0.0
        %363 = vmatpush1.msra.mxu0 0.0
        %364 = vmatprep.subr.mxu0 0.0
        %365 = vmatpush1.msra.mxu0 0.0
        %366 = vmatprep.subr.mxu0 0.0
        %367 = vmatpush1.msra.mxu0 0.0
        %368 = vmatprep.subr.mxu0 0.0
        %369 = vmatpush1.msra.mxu0 0.0
        %370 = vmatprep.mubr.f32.mxu0 0.0
        %371 = vmatmul.mubr.f32.gmra.mrb[0].mxu0 %v300
        %v372 = vpop.f32.mrb[0].mxu0
        %v373 = vadd.f32 %v296, %v372
        %v374 = vpop.f32.mrb[0].mxu0
        %375 = vdwg.mxu0
        %vm376 = vcmp.gt.f32.partialorder %v373, 0.0
        %v377 = vmul.f32 %v373, 0.01
        %v378 = vsel %vm376, %v373, %v377
        %v379 = vld [vmem:[%s3] sm:$0xff]
        %v380 = vld [vmem:[%s3 + $0x8] sm:$0xff]
        %v381 = vld [vmem:[%s3 + $0x10] sm:$0xff]
        %v382 = vld [vmem:[%s3 + $0x18] sm:$0xff]
        %v383 = vld [vmem:[%s4] sm:$0x1]
        %v385 = vlaneseq
        %v386 = vshrl.u32 %v385, 7
        %v387 = vsub.s32 0, %v386
        %v388 = vrot.slane %v383, %v387
        %vm390 = vcmask 261120
        %v392 = vsel %vm390, %v378, 0
        %394 = vmatprep.subr.mxu0 0.0
        %395 = vmatpush1.msra.mxu0 %v379
        %396 = vmatprep.subr.mxu0 0.0
        %397 = vmatpush1.msra.mxu0 %v380
        %398 = vmatprep.subr.mxu0 0.0
        %399 = vmatpush1.msra.mxu0 %v381
        %400 = vmatprep.subr.mxu0 0.0
        %401 = vmatpush1.msra.mxu0 %v382
        %402 = vmatprep.subr.mxu0 0.0
        %403 = vmatpush1.msra.mxu0 0.0
        %404 = vmatprep.subr.mxu0 0.0
        %405 = vmatpush1.msra.mxu0 0.0
        %406 = vmatprep.subr.mxu0 0.0
        %407 = vmatpush1.msra.mxu0 0.0
        %408 = vmatprep.subr.mxu0 0.0
        %409 = vmatpush1.msra.mxu0 0.0
        %410 = vmatprep.subr.mxu0 0.0
        %411 = vmatpush1.msra.mxu0 0.0
        %412 = vmatprep.subr.mxu0 0.0
        %413 = vmatpush1.msra.mxu0 0.0
        %414 = vmatprep.subr.mxu0 0.0
        %415 = vmatpush1.msra.mxu0 0.0
        %416 = vmatprep.subr.mxu0 0.0
        %417 = vmatpush1.msra.mxu0 0.0
        %418 = vmatprep.subr.mxu0 0.0
        %419 = vmatpush1.msra.mxu0 0.0
        %420 = vmatprep.subr.mxu0 0.0
        %421 = vmatpush1.msra.mxu0 0.0
        %422 = vmatprep.subr.mxu0 0.0
        %423 = vmatpush1.msra.mxu0 0.0
        %424 = vmatprep.subr.mxu0 0.0
        %425 = vmatpush1.msra.mxu0 0.0
        %426 = vmatprep.subr.mxu0 0.0
        %427 = vmatpush1.msra.mxu0 0.0
        %428 = vmatprep.subr.mxu0 0.0
        %429 = vmatpush1.msra.mxu0 0.0
        %430 = vmatprep.subr.mxu0 0.0
        %431 = vmatpush1.msra.mxu0 0.0
        %432 = vmatprep.subr.mxu0 0.0
        %433 = vmatpush1.msra.mxu0 0.0
        %434 = vmatprep.subr.mxu0 0.0
        %435 = vmatpush1.msra.mxu0 0.0
        %436 = vmatprep.subr.mxu0 0.0
        %437 = vmatpush1.msra.mxu0 0.0
        %438 = vmatprep.subr.mxu0 0.0
        %439 = vmatpush1.msra.mxu0 0.0
        %440 = vmatprep.subr.mxu0 0.0
        %441 = vmatpush1.msra.mxu0 0.0
        %442 = vmatprep.subr.mxu0 0.0
        %443 = vmatpush1.msra.mxu0 0.0
        %444 = vmatprep.subr.mxu0 0.0
        %445 = vmatpush1.msra.mxu0 0.0
        %446 = vmatprep.subr.mxu0 0.0
        %447 = vmatpush1.msra.mxu0 0.0
        %448 = vmatprep.subr.mxu0 0.0
        %449 = vmatpush1.msra.mxu0 0.0
        %450 = vmatprep.subr.mxu0 0.0
        %451 = vmatpush1.msra.mxu0 0.0
        %452 = vmatprep.subr.mxu0 0.0
        %453 = vmatpush1.msra.mxu0 0.0
        %454 = vmatprep.subr.mxu0 0.0
        %455 = vmatpush1.msra.mxu0 0.0
        %456 = vmatprep.subr.mxu0 0.0
        %457 = vmatpush1.msra.mxu0 0.0
        %458 = vmatprep.mubr.f32.mxu0 0.0
        %459 = vmatmul.mubr.f32.gmra.mrb[0].mxu0 %v392
        %v460 = vpop.f32.mrb[0].mxu0
        %v461 = vadd.f32 %v388, %v460
        %v462 = vpop.f32.mrb[0].mxu0
        %463 = vdwg.mxu0
        %vm464 = vcmp.gt.f32.partialorder %v461, 0.0
        %v465 = vmul.f32 %v461, 0.01
        %v466 = vsel %vm464, %v461, %v465
        %v467 = vld [vmem:[#allocation2] sm:$0xff]
        %v468 = vld [vmem:[#allocation2 + $0x8] sm:$0xff]
        %v469 = vld [vmem:[#allocation2 + $0x10] sm:$0xff]
        %v470 = vld [vmem:[#allocation2 + $0x18] sm:$0xff]
        %v471 = vld [vmem:[%s6] sm:$0x1]
        %v473 = vlaneseq
        %v474 = vshrl.u32 %v473, 7
        %v475 = vsub.s32 0, %v474
        %v476 = vrot.slane %v471, %v475
        %v479 = vsel %vm390, %v466, 0
        %481 = vmatprep.subr.mxu0 0.0
        %482 = vmatpush1.msra.mxu0 %v467
        %483 = vmatprep.subr.mxu0 0.0
        %484 = vmatpush1.msra.mxu0 %v468
        %485 = vmatprep.subr.mxu0 0.0
        %486 = vmatpush1.msra.mxu0 %v469
        %487 = vmatprep.subr.mxu0 0.0
        %488 = vmatpush1.msra.mxu0 %v470
        %489 = vmatprep.subr.mxu0 0.0
        %490 = vmatpush1.msra.mxu0 0.0
        %491 = vmatprep.subr.mxu0 0.0
        %492 = vmatpush1.msra.mxu0 0.0
        %493 = vmatprep.subr.mxu0 0.0
        %494 = vmatpush1.msra.mxu0 0.0
        %495 = vmatprep.subr.mxu0 0.0
        %496 = vmatpush1.msra.mxu0 0.0
        %497 = vmatprep.subr.mxu0 0.0
        %498 = vmatpush1.msra.mxu0 0.0
        %499 = vmatprep.subr.mxu0 0.0
        %500 = vmatpush1.msra.mxu0 0.0
        %501 = vmatprep.subr.mxu0 0.0
        %502 = vmatpush1.msra.mxu0 0.0
        %503 = vmatprep.subr.mxu0 0.0
        %504 = vmatpush1.msra.mxu0 0.0
        %505 = vmatprep.subr.mxu0 0.0
        %506 = vmatpush1.msra.mxu0 0.0
        %507 = vmatprep.subr.mxu0 0.0
        %508 = vmatpush1.msra.mxu0 0.0
        %509 = vmatprep.subr.mxu0 0.0
        %510 = vmatpush1.msra.mxu0 0.0
        %511 = vmatprep.subr.mxu0 0.0
        %512 = vmatpush1.msra.mxu0 0.0
        %513 = vmatprep.subr.mxu0 0.0
        %514 = vmatpush1.msra.mxu0 0.0
        %515 = vmatprep.subr.mxu0 0.0
        %516 = vmatpush1.msra.mxu0 0.0
        %517 = vmatprep.subr.mxu0 0.0
        %518 = vmatpush1.msra.mxu0 0.0
        %519 = vmatprep.subr.mxu0 0.0
        %520 = vmatpush1.msra.mxu0 0.0
        %521 = vmatprep.subr.mxu0 0.0
        %522 = vmatpush1.msra.mxu0 0.0
        %523 = vmatprep.subr.mxu0 0.0
        %524 = vmatpush1.msra.mxu0 0.0
        %525 = vmatprep.subr.mxu0 0.0
        %526 = vmatpush1.msra.mxu0 0.0
        %527 = vmatprep.subr.mxu0 0.0
        %528 = vmatpush1.msra.mxu0 0.0
        %529 = vmatprep.subr.mxu0 0.0
        %530 = vmatpush1.msra.mxu0 0.0
        %531 = vmatprep.subr.mxu0 0.0
        %532 = vmatpush1.msra.mxu0 0.0
        %533 = vmatprep.subr.mxu0 0.0
        %534 = vmatpush1.msra.mxu0 0.0
        %535 = vmatprep.subr.mxu0 0.0
        %536 = vmatpush1.msra.mxu0 0.0
        %537 = vmatprep.subr.mxu0 0.0
        %538 = vmatpush1.msra.mxu0 0.0
        %539 = vmatprep.subr.mxu0 0.0
        %540 = vmatpush1.msra.mxu0 0.0
        %541 = vmatprep.subr.mxu0 0.0
        %542 = vmatpush1.msra.mxu0 0.0
        %543 = vmatprep.subr.mxu0 0.0
        %544 = vmatpush1.msra.mxu0 0.0
        %545 = vmatprep.mubr.f32.mxu0 0.0
        %546 = vmatmul.mubr.f32.gmra.mrb[0].mxu0 %v479
        %v547 = vpop.f32.mrb[0].mxu0
        %v548 = vadd.f32 %v476, %v547
        %v549 = vpop.f32.mrb[0].mxu0
        %550 = vdwg.mxu0
        %551 = vmax.xlane.f32.xlu0 %v548
        %v552 = vpop.xlane.xlu0 %551
        %v553 = vsub.f32 %v548, %v552
        %v554 = vmul.f32 %v553, 1.442695
        %v555 = vpow.pop %v554
        %556 = vadd.xlane.f32.xlu0 %v555
        %v557 = vpop.xlane.xlu0 %556
        %v558 = vrcp.pop %v557
        %v559 = vmul.f32 %v557, %v558
        %v560 = vsub.f32 2.0, %v559
        %v561 = vmul.f32 %v558, %v560
        %v562 = vmul.f32 %v555, %v561
        %v563 = vlog2.pop %v557
        %v564 = vmul.f32 %v563, 0.6931472
        %v565 = vmul.f32 %v562, %v553
        %566 = vadd.xlane.f32.xlu0 %v565
        %v567 = vpop.xlane.xlu0 %566
        %v568 = vsub.f32 %v564, %v567
        %v569 = vlaneseq
        %v570 = vand.u32 %v569, 127
        %vm571 = vcmp.eq.s32.totalorder %v570, 2
        %v572 = vsel %vm571, %v568, %v562
        %573 = vst [vmem:[%s284] sm:$0xff] %v572
        %s574 = sand.u32 %s182, 1
        %s575 = scalar_lea.sflag [#allocation4], %s574
        %s576 = sand.u32 %s182, 1
        %s577 = smul.addr %s576, 8
        %s578 = scalar_lea.vmem [#allocation5], %s577
        // Predicated region
        $region53: #{tpu_custom_call.1} parent=47 // pred_check
          %p579 = pneg %p192
        $region54: #{tpu_custom_call.1} parent=47 // pred_check_branch
          %581 = sbr.rel (%p579) target = $region56
        $region55: #{tpu_custom_call.1} parent=47 // pred_region
          %s583 = ssub.s32 128, 128
          %584 = vsyncadd %s575, %s583
          %s585 = smul.addr %s22, 128
          %s586 = scalar_lea.hbm %s7, %s585
          %s588 = sshll.u32 %s578, 4
          %s589 = int_to_ptr.vmem [resolvable:$true] %s588
          %591 = dma.vmem_to_hbm [thread:$0]  %s589, 128, %s586, %s575
        $region56: #{tpu_custom_call.1} parent=47 // pred_fallthru
          _
      $region48: #{tpu_custom_call.1} parent=5 // pred_fallthru
        _
      %p592 = scmp.le.s32.totalorder 2, %s17
      // Predicated region
      $region57: #{tpu_custom_call.1} parent=5 // pred_check
        %p593 = pneg %p592
      $region58: #{tpu_custom_call.1} parent=5 // pred_check_branch
        %595 = sbr.rel (%p593) target = $region60
      $region59: #{tpu_custom_call.1} parent=5 // pred_region
        %s596 = ssub.s32 %s17, 2
        // Predicated region
        $region61: #{tpu_custom_call.1} parent=59 // pred_check
          %p597 = pneg %p198
        $region62: #{tpu_custom_call.1} parent=59 // pred_check_branch
          %599 = sbr.rel (%p597) target = $region64
        $region63: #{tpu_custom_call.1} parent=59 // pred_region
          %s600 = sand.u32 %s183, 1
          %s601 = scalar_lea.sflag [#allocation4], %s600
          %s602 = sand.u32 %s183, 1
          %s603 = smul.addr %s602, 8
          %s604 = scalar_lea.vmem [#allocation5], %s603
          %605 = dma.done %s601, 128
        $region64: #{tpu_custom_call.1} parent=59 // pred_fallthru
          _
      $region60: #{tpu_custom_call.1} parent=5 // pred_fallthru
        _
    $region6: #{tpu_custom_call.1} parent=1 // loop_footer
      %s21 = sadd.s32 1, %s17
    $region7: #{tpu_custom_call.1} parent=1 // loop_footer_branch
      %16 = sbr.rel target = $region3
    $region8: #{tpu_custom_call.1} parent=1 // loop_exit
      _
    %606 = vsyncpa [#allocation3], 1
    %s607 = scalar_lea.sflag [#allocation3], 1
    %608 = vsyncpa %s607, 1
    %609 = vsyncpa [#allocation4], 1
    %s610 = scalar_lea.sflag [#allocation4], 1
    %611 = vsyncpa %s610, 1

</llo_original>
